<compile_context>
chip_gen: v7x
topology: tpu7x:2x2x1
jax: 0.10.0
libtpu: 0.0.40
codegen_flags: <defaults>
</compile_context>

<pallas_src>
import math

import jax
import jax.numpy as jnp
from jax.experimental import pallas as pl
from jax.experimental.pallas import tpu as pltpu


def _round_up(n, m):
    return ((n + m - 1) // m) * m


def _kernel(x_ref, wp_ref, out_ref):
    # x_ref: (tb, 1)   wp_ref: (2, P)   out_ref: (tb, P), P a multiple of 128
    x = x_ref[...]                                   # (tb, 1)
    scale = wp_ref[0:1, :]                           # (1, P)
    phase = wp_ref[1:2, :]                           # (1, P)
    theta = x * scale + phase                        # (tb, P) outer-product broadcast
    out = jnp.sin(theta)                             # single polynomial; cos via +pi/2 phase
    lane = jax.lax.broadcasted_iota(jnp.int32, out.shape, 1)
    out = jnp.where(lane == 0, x, out)               # lane 0 carries the raw timestep
    out_ref[...] = out.astype(out_ref.dtype)


def _build_rows(weights, half_dim, out_dim, pd):
    """(2, pd) lane-dense [scale; phase] rows.  Hoist out of the hot path if the
    weights are reused across many calls in a step."""
    w_scaled = weights.astype(jnp.float32) * (2.0 * math.pi)
    z1 = jnp.zeros((1,), jnp.float32)
    zpad = jnp.zeros((pd - out_dim,), jnp.float32)
    scale_row = jnp.concatenate([z1, w_scaled, w_scaled, zpad])
    phase_row = jnp.concatenate(
        [z1, jnp.zeros((half_dim,), jnp.float32),
         jnp.full((half_dim,), 0.5 * math.pi, jnp.float32), zpad])
    return jnp.stack([scale_row, phase_row], axis=0)          # (2, pd)


def learned_sinusoidal_pos_emb(x, weights, *, block_b=2048, single_block_max=1024,
                               out_dtype=jnp.float32, return_padded=False):
    """x: (b,) float, weights: (half_dim,) float -> (b, 2*half_dim + 1) (or (b, pd)
    lane-padded slab if return_padded=True)."""
    b = x.shape[0]
    half_dim = weights.shape[0]
    out_dim = 2 * half_dim + 1
    pd = _round_up(out_dim, 128)                     # lane-dense padded output width

    x2d = x.reshape(b, 1).astype(jnp.float32)
    wp = _build_rows(weights, half_dim, out_dim, pd)

    if b <= single_block_max:
        # Single block, no grid: whole problem is a handful of vregs in VMEM.
        out_padded = pl.pallas_call(
            _kernel,
            out_shape=jax.ShapeDtypeStruct((b, pd), out_dtype),
            in_specs=[
                pl.BlockSpec(memory_space=pltpu.MemorySpace.VMEM),
                pl.BlockSpec(memory_space=pltpu.MemorySpace.VMEM),
            ],
            out_specs=pl.BlockSpec(memory_space=pltpu.MemorySpace.VMEM),
        )(x2d, wp)
    else:
        # Tiled over batch, ragged final block (Pallas masks its writes).
        # Shrink the block just enough to guarantee >= 2 grid steps so the
        # "parallel" axis can use both TensorCores on v7x.
        bb = max(8, min(block_b, _round_up(pl.cdiv(b, 2), 8)))
        grid = (pl.cdiv(b, bb),)
        out_padded = pl.pallas_call(
            _kernel,
            out_shape=jax.ShapeDtypeStruct((b, pd), out_dtype),
            grid=grid,
            in_specs=[
                pl.BlockSpec((bb, 1), lambda i: (i, 0)),
                pl.BlockSpec((2, pd), lambda i: (0, 0)),
            ],
            out_specs=pl.BlockSpec((bb, pd), lambda i: (i, 0)),
            compiler_params=pltpu.CompilerParams(
                dimension_semantics=("parallel",)),
        )(x2d, wp)

    if return_padded:
        return out_padded                             # pad lanes are exactly 0
    return out_padded[:, :out_dim]


def _reference(x, weights):
    x2 = x.reshape(-1, 1).astype(jnp.float32)
    freqs = x2 * weights.reshape(1, -1).astype(jnp.float32) * 2.0 * math.pi
    return jnp.concatenate([x2, jnp.sin(freqs), jnp.cos(freqs)], axis=-1)


if __name__ == "__main__":
    dim = 32                        # module __init__ arg; must be even
    half_dim = dim // 2

    key = jax.random.PRNGKey(0)
    k_w, k_x1, k_x2 = jax.random.split(key, 3)
    # nn.Parameter(torch.randn(half_dim)) -> deterministic synthetic init here
    weights = jax.random.normal(k_w, (half_dim,), dtype=jnp.float32)

    # Small-batch path (single block, no grid).
    batch = 8
    x = jax.random.uniform(k_x1, (batch,), dtype=jnp.float32)   # diffusion timesteps in [0, 1)
    out = jax.block_until_ready(learned_sinusoidal_pos_emb(x, weights))
    ref = _reference(x, weights)
    assert out.shape == (batch, dim + 1), out.shape
    assert jnp.allclose(out, ref, atol=2e-5, rtol=1e-4), "small-batch mismatch vs reference"

    # Tiled path: ragged grid (no padding), >=2 grid steps ("parallel" axis).
    big_batch = 2500
    xb = jax.random.uniform(k_x2, (big_batch,), dtype=jnp.float32)
    out_b = jax.block_until_ready(learned_sinusoidal_pos_emb(xb, weights))
    ref_b = _reference(xb, weights)
    assert out_b.shape == (big_batch, dim + 1), out_b.shape
    assert jnp.allclose(out_b, ref_b, atol=2e-5, rtol=1e-4), "large-batch mismatch vs reference"

    # Padded-slab return (hot-path option): valid lanes match, pad lanes are 0.
    out_p = jax.block_until_ready(
        learned_sinusoidal_pos_emb(xb, weights, return_padded=True))
    assert out_p.shape[1] % 128 == 0
    assert jnp.allclose(out_p[:, :dim + 1], ref_b, atol=2e-5, rtol=1e-4)
    assert jnp.all(out_p[:, dim + 1:] == 0.0)

    print("KERNEL_OK")
</pallas_src>

<mosaic_0001>
module attributes {stable_mosaic.version = 11 : i64} {
  func.func @_kernel(%arg0: memref<8x1xf32, #tpu.memory_space<vmem>>, %arg1: memref<2x128xf32, #tpu.memory_space<vmem>>, %arg2: memref<8x128xf32, #tpu.memory_space<vmem>>) attributes {dimension_semantics = [], scalar_prefetch = 0 : i64, scratch_operands = 0 : i64, tpu.core_type = #tpu.core_type<tc>} {
    %c0 = arith.constant 0 : index
    %c0_0 = arith.constant 0 : index
    %0 = vector.load %arg0[%c0, %c0_0] : memref<8x1xf32, #tpu.memory_space<vmem>>, vector<8x1xf32>
    %c0_1 = arith.constant 0 : index
    %c0_2 = arith.constant 0 : index
    %1 = vector.load %arg1[%c0_1, %c0_2] : memref<2x128xf32, #tpu.memory_space<vmem>>, vector<1x128xf32>
    %c1 = arith.constant 1 : index
    %c0_3 = arith.constant 0 : index
    %2 = vector.load %arg1[%c1, %c0_3] : memref<2x128xf32, #tpu.memory_space<vmem>>, vector<1x128xf32>
    %3 = vector.broadcast %0 : vector<8x1xf32> to vector<8x128xf32>
    %4 = vector.broadcast %1 : vector<1x128xf32> to vector<8x128xf32>
    %5 = arith.mulf %3, %4 : vector<8x128xf32>
    %6 = vector.broadcast %2 : vector<1x128xf32> to vector<8x128xf32>
    %7 = arith.addf %5, %6 : vector<8x128xf32>
    %8 = math.sin %7 : vector<8x128xf32>
    %9 = tpu.iota {dimensions = array<i32: 1>} : vector<8x128xi32>
    %c0_i32 = arith.constant 0 : i32
    %10 = vector.broadcast %c0_i32 : i32 to vector<8x128xi32>
    %11 = arith.cmpi eq, %9, %10 : vector<8x128xi32>
    %12 = vector.shape_cast %0 : vector<8x1xf32> to vector<8x1xf32>
    %13 = vector.broadcast %12 : vector<8x1xf32> to vector<8x128xf32>
    %14 = arith.select %11, %13, %8 : vector<8x128xi1>, vector<8x128xf32>
    %c0_4 = arith.constant 0 : index
    %c0_5 = arith.constant 0 : index
    %15 = vector.load %arg2[%c0_4, %c0_5] : memref<8x128xf32, #tpu.memory_space<vmem>>, vector<8x128xf32>
    tpu.vector_store %arg2[%c0_4, %c0_5], %14 {strides = array<i32>} : memref<8x128xf32, #tpu.memory_space<vmem>>, vector<8x128xf32>,
    return
  }
}

</mosaic_0001>

<llo_original>
// kernel: tpu_custom_call.1
$region0: #{tpu_custom_call.1}
  #allocation0 [shape = 'u32[]', space=smem, size = 0x4, offset = 0x4, fixed_abs, tag = 'smem constant byte address 0x4 - core index']
  #allocation1 [shape = 'u32[144,128]{1,0:T(1,128)}', space=vmem, size = 0x12000, scoped, tag = 'internal scratch']
  %s0 = inlined_call_operand.vmem [shape: f32[8,1], index: 0, kind: input, shape index: {}]
  %s1 = inlined_call_operand.vmem [shape: f32[2,128], index: 1, kind: input, shape index: {}]
  %s2 = inlined_call_operand.hbm [shape: f32[8,128], index: 2, kind: output, shape index: {}]
  %s3 = sld [smem:[#allocation0]]
  $region18: #{tpu_custom_call.1} parent=0
    _
  %s5 = ssub.s32 1, %s3
  %s6 = scalar_select 0, %s5, %s3
  $region1: #{tpu_custom_call.1} parent=0
    #allocation2 [shape = 'u8[4096]{0}', space=vmem, size = 0x1000, scoped, tag = 'output window, operand 0, single buffered']
    #allocation3 [shape = 's32[1]{0}', space=sflag, size = 0x4, scoped, tag = 'scoped memory for tpu_custom_call.1']
    %7 = vsyncpa [#allocation3], 0
    // Predicated region
    $region2: #{tpu_custom_call.1} parent=1 // pred_check
      _
    $region3: #{tpu_custom_call.1} parent=1 // pred_check_branch
      %9 = sbr.rel (0) target = $region5
    $region4: #{tpu_custom_call.1} parent=1 // pred_region
      _
    $region5: #{tpu_custom_call.1} parent=1 // pred_fallthru
      _
    // Predicated region
    $region6: #{tpu_custom_call.1} parent=1 // pred_check
      _
    $region7: #{tpu_custom_call.1} parent=1 // pred_check_branch
      %11 = sbr.rel (0) target = $region9
    $region8: #{tpu_custom_call.1} parent=1 // pred_region
      _
    $region9: #{tpu_custom_call.1} parent=1 // pred_fallthru
      _
    %v12 = vld [vmem:[%s0] sm:$0xff]
    %v13 = vld [vmem:[%s1] sm:$0x1]
    %v14 = vld [vmem:[%s1 + $0x1] sm:$0x1]
    %16 = vset.pattern.permute.xlu0 0
    %17 = vperm.xlu0 %16, %v12
    %v18 = vpop.permute.xlu0 %17
    %v20 = vlaneseq
    %v21 = vshrl.u32 %v20, 7
    %v22 = vsub.s32 0, %v21
    %v23 = vrot.slane %v13, %v22
    %v24 = vmul.f32 %v18, %v23
    %v25 = vlaneseq
    %v26 = vshrl.u32 %v25, 7
    %v27 = vsub.s32 0, %v26
    %v28 = vrot.slane %v14, %v27
    %v29 = vadd.f32 %v24, %v28
    %v30 = vand.u32 2147483647, %v29
    %vm31 = vcmp.le.f32.partialorder %v30, 0.7853982
    %vm32 = vcmp.lt.s32.totalorder %v29, 0
    %v33 = vand.u32 %v29, 2139095040
    %v34 = vshrl.u32 %v33, 23
    %v35 = vsub.s32 %v34, 127
    %v36 = vand.u32 2147483647, %v29
    %v37 = vand.u32 %v36, 8388607
    %v38 = vor.u32 %v37, 8388608
    %v39 = vsub.s32 0, %v38
    %v40 = vadd.s32 %v35, 1
    %vm41 = vcmp.gt.s32.totalorder %v40, 0
    %v42 = vsel %vm41, %v40, 0
    %v43 = vshrl.u32 %v42, 5
    %v44 = vand.u32 %v42, 31
    %v45 = vsub.s32 32, %v44
    %v46 = vshrl.u32 683565275, %v45
    %v47 = vshll.u32 683565275, %v44
    %v48 = vshrl.u32 2475754826, %v45
    %v49 = vor.u32 %v47, %v48
    %v50 = vshll.u32 2475754826, %v44
    %v51 = vshrl.u32 2131351028, %v45
    %v52 = vor.u32 %v50, %v51
    %v53 = vshll.u32 2131351028, %v44
    %v54 = vshrl.u32 2102212464, %v45
    %v55 = vor.u32 %v53, %v54
    %v56 = vshll.u32 2102212464, %v44
    %v57 = vshrl.u32 920167782, %v45
    %v58 = vor.u32 %v56, %v57
    %v59 = vshll.u32 920167782, %v44
    %v60 = vshrl.u32 1326507024, %v45
    %v61 = vor.u32 %v59, %v60
    %vm62 = vcmp.lt.s32.totalorder %v43, 1
    %vm63 = vcmp.lt.s32.totalorder %v43, 2
    %vm64 = vcmp.lt.s32.totalorder %v43, 3
    %vm65 = vcmp.lt.s32.totalorder %v43, 4
    %v66 = vsel %vm62, %v46, %v49
    %v67 = vsel %vm65, %v55, 2102212464
    %v68 = vsel %vm64, %v52, %v67
    %v69 = vsel %vm63, %v66, %v68
    %v70 = vsel %vm62, %v49, %v52
    %v71 = vsel %vm65, %v58, 920167782
    %v72 = vsel %vm64, %v55, %v71
    %v73 = vsel %vm63, %v70, %v72
    %v74 = vsel %vm62, %v52, %v55
    %v75 = vsel %vm65, %v61, 1326507024
    %v76 = vsel %vm64, %v58, %v75
    %v77 = vsel %vm63, %v74, %v76
    %v78 = vshll.u32 %v38, 8
    %v79 = vmul.u32.u64.compose %v78, %v77
    %v80 = vextract.low.u32 %v79
    %v81 = vextract.high.u32 %v79
    %v82 = vmul.u32.u64.compose %v78, %v73
    %v83 = vextract.low.u32 %v82
    %v84 = vextract.high.u32 %v82
    %v85 = vmul.u32 %v78, %v69
    %v86 = vadd.s32 %v81, %v83
    %vm87 = vc.u32 %v81, %v83
    %v88 = vadd.s32 %v84, 1
    %v89 = vsel %vm87, %v88, %v84
    %v90 = vadd.s32 %v85, %v89
    %v91 = vadd.s32 %v90, 536870912
    %v92 = vshrl.u32 %v91, 30
    %v93 = vshll.u32 %v92, 30
    %v94 = vsub.s32 %v90, %v93
    %vm95 = vcmp.lt.s32.totalorder %v94, 0
    %v96 = vsub.s32 0, %v94
    %v97 = vsel %vm95, %v96, %v94
    %v98 = vclz %v97
    %v99 = vsub.s32 %v98, 2
    %vm100 = vcmp.gt.s32.totalorder 0, %v99
    %v101 = vsel %vm100, 0, %v99
    %v102 = vsub.s32 32, %v101
    %v103 = vshll.u32 %v94, %v101
    %v104 = vshrl.u32 %v86, %v102
    %v105 = vor.u32 %v103, %v104
    %v106 = vsub.s32 4294967266, %v101
    %v107 = vadd.s32 %v106, 127
    %v108 = vshll.u32 %v107, 23
    %v109 = vor.u32 4788187, %v108
    %v110 = vand.u32 2147483647, %v109
    %v112 = vcvt.s32.f32 %v105
    %v113 = vmul.f32 %v112, %v110
    %v114 = vxor.u32 %v113, 2147483648
    %v115 = vsel %vm32, %v114, %v113
    %v116 = vsub.s32 4, %v92
    %v117 = vsel %vm32, %v116, %v92
    %v118 = vsel %vm31, %v29, %v115
    %v119 = vsel %vm31, 0, %v117
    %v120 = vcosq.f32.pop %v118
    %v121 = vsinq.f32.pop %v118
    %vm122 = vweird.f32 %v29
    %v123 = vadd.s32 %v119, 3
    %v124 = vand.u32 %v123, 3
    %vm125 = vcmp.lt.s32.totalorder %v124, 2
    %vm126 = vcmp.eq.s32.totalorder %v124, 0
    %v127 = vxor.u32 %v121, 2147483648
    %v128 = vsel %vm126, %v120, %v127
    %vm129 = vcmp.eq.s32.totalorder %v124, 2
    %v130 = vxor.u32 %v120, 2147483648
    %v131 = vsel %vm129, %v130, %v121
    %v132 = vsel %vm125, %v128, %v131
    %v133 = vsel %vm122, nan, %v132
    %v134 = vlaneseq
    %v135 = vand.u32 %v134, 127
    %vm136 = vcmp.eq.s32.totalorder %v135, 0
    %v137 = vsel %vm136, %v18, %v133
    %138 = vst [vmem:[#allocation2] sm:$0xff] %v137
    // Predicated region
    $region10: #{tpu_custom_call.1} parent=1 // pred_check
      _
    $region11: #{tpu_custom_call.1} parent=1 // pred_check_branch
      %140 = sbr.rel (0) target = $region13
    $region12: #{tpu_custom_call.1} parent=1 // pred_region
      %s142 = ssub.s32 128, 128
      %143 = vsyncadd [#allocation3], %s142
      %s145 = sshll.u32 [#allocation2], 4
      %s146 = int_to_ptr.vmem [resolvable:$true] %s145
      %148 = dma.vmem_to_hbm [thread:$0]  %s146, 128, %s2, [#allocation3]
    $region13: #{tpu_custom_call.1} parent=1 // pred_fallthru
      _
    // Predicated region
    $region14: #{tpu_custom_call.1} parent=1 // pred_check
      _
    $region15: #{tpu_custom_call.1} parent=1 // pred_check_branch
      %150 = sbr.rel (0) target = $region17
    $region16: #{tpu_custom_call.1} parent=1 // pred_region
      %151 = dma.done [#allocation3], 128
    $region17: #{tpu_custom_call.1} parent=1 // pred_fallthru
      _
    %152 = vsyncpa [#allocation3], 1

</llo_original>
